<compile_context>
chip_gen: v6e
topology: v6e:2x2x1
jax: 0.10.0
libtpu: 0.0.40
codegen_flags: <defaults>
</compile_context>

<pallas_src>
import functools

import jax
import jax.numpy as jnp
from jax import lax
from jax.experimental import pallas as pl
from jax.experimental.pallas import tpu as pltpu


_VMEM = pl.BlockSpec(memory_space=pltpu.MemorySpace.VMEM)
_SMEM = pl.BlockSpec(memory_space=pltpu.MemorySpace.SMEM)


# ----------------------------------------------------------------------------
# Kernels
# ----------------------------------------------------------------------------
def _lif_step_kernel(dmem_ref, mem_ref, params_ref, out_ref, new_mem_ref, stats_ref):
    thr = params_ref[0]            # SMEM scalars (one merged (2,) operand)
    leak = params_ref[1]
    B, D = dmem_ref.shape

    # mem arrives as (1, D) or (B, D); broadcast happens here, not in the wrapper.
    mem = leak * jnp.broadcast_to(mem_ref[...], (B, D)) + dmem_ref[...]
    # (mem / thr - 1 > 0)  ==  (mem > thr)  for thr > 0 : no per-element divide.
    spike = (mem > thr).astype(jnp.float32)
    mem_new = mem - thr * spike

    out_ref[...] = spike
    new_mem_ref[...] = mem_new
    stats_ref[0] = jnp.max(mem_new)      # packed stats, scalar stores to SMEM
    stats_ref[1] = jnp.min(mem_new)


def _lif_seq_kernel(dseq_ref, mem0_ref, params_ref, out_ref, memf_ref, mem_scr):
    thr = params_ref[0]
    leak = params_ref[1]
    tc, B, Dblk = dseq_ref.shape         # static chunk block shape
    c = pl.program_id(1)                 # T-chunk index ("arbitrary" axis)

    @pl.when(c == 0)
    def _init():
        mem_scr[...] = jnp.broadcast_to(mem0_ref[...], (B, Dblk))

    # Hoist scalar->vector broadcasts out of the (partially unrolled) time loop;
    # JAX does not CSE broadcast_in_dim.
    thr_v = jnp.broadcast_to(thr, (B, Dblk))
    leak_v = jnp.broadcast_to(leak, (B, Dblk))

    def body(t, mem):
        mem = leak_v * mem + dseq_ref[t]                 # leaky integration
        spike = (mem > thr_v).astype(jnp.float32)        # LinearSpike forward
        out_ref[t] = spike.astype(out_ref.dtype)         # bf16 store: half the bytes
        return mem - thr_v * spike                       # soft reset

    # Carry the membrane in vregs within the chunk (scratch holds it across
    # chunks); unroll capped to bound vreg pressure at real layer sizes.
    mem = lax.fori_loop(0, tc, body, mem_scr[...], unroll=4)
    mem_scr[...] = mem

    @pl.when(c == pl.num_programs(1) - 1)
    def _finalize():
        memf_ref[...] = mem


# ----------------------------------------------------------------------------
# Wrappers
# ----------------------------------------------------------------------------
def _as_params(threshold, leak):
    return jnp.stack([jnp.asarray(threshold, jnp.float32).reshape(()),
                      jnp.asarray(leak, jnp.float32).reshape(())])


def _as_row(mem, D):
    mem = jnp.asarray(mem, jnp.float32)
    if mem.ndim == 1:
        mem = mem.reshape(1, D)
    return mem


def _choose_d_block(D):
    for db in (512, 256, 128):
        if D % db == 0:
            return db
    return D   # TODO(synk): pad D to a multiple of 128 for arbitrary SNN widths


def _choose_t_chunk(T, bytes_per_step, target_bytes=1 << 21):
    cap = max(1, target_bytes // max(bytes_per_step, 1))
    tc = 1
    for c in range(1, T + 1):
        if T % c == 0 and c <= cap:
            tc = c
    return tc


@jax.jit
def lif_forward(delta_mem, mem, threshold, leak):
    """One LIF.forward step. Returns (spikes, new_mem, max_mem, min_mem)."""
    delta_mem = delta_mem.astype(jnp.float32)
    B, D = delta_mem.shape
    mem2d = _as_row(mem, D)              # (1, D) or (B, D); kernel broadcasts

    out, new_mem, stats = pl.pallas_call(
        _lif_step_kernel,
        out_shape=(
            jax.ShapeDtypeStruct((B, D), jnp.float32),   # spikes
            jax.ShapeDtypeStruct((B, D), jnp.float32),   # updated membrane
            jax.ShapeDtypeStruct((2,), jnp.float32),     # [max_mem, min_mem]
        ),
        in_specs=[_VMEM, _VMEM, _SMEM],
        out_specs=(_VMEM, _VMEM, _SMEM),
    )(delta_mem, mem2d, _as_params(threshold, leak))
    return out, new_mem, stats[0], stats[1]


@functools.partial(jax.jit, static_argnames=("t_chunk", "spike_dtype"))
def lif_sequence_forward(delta_seq, mem0, threshold, leak, *,
                         t_chunk=None, spike_dtype=jnp.bfloat16):
    """Apply LIF.forward over T timesteps, pipelined over T-chunks in one pallas_call."""
    delta_seq = delta_seq.astype(jnp.float32)
    T, B, D = delta_seq.shape
    mem0 = _as_row(mem0, D)
    R = mem0.shape[0]

    d_blk = _choose_d_block(D)
    if t_chunk is None:
        t_chunk = _choose_t_chunk(T, B * d_blk * 4)
    assert T % t_chunk == 0 and D % d_blk == 0
    nd, nt = D // d_blk, T // t_chunk

    grid_spec = pltpu.PrefetchScalarGridSpec(
        num_scalar_prefetch=0,
        grid=(nd, nt),                                   # (parallel D-blocks, sequential T-chunks)
        in_specs=[
            pl.BlockSpec((t_chunk, B, d_blk), lambda d, c: (c, 0, d)),
            pl.BlockSpec((R, d_blk), lambda d, c: (0, d)),
            pl.BlockSpec(memory_space=pltpu.MemorySpace.SMEM),   # (2,) params
        ],
        out_specs=(
            pl.BlockSpec((t_chunk, B, d_blk), lambda d, c: (c, 0, d)),
            pl.BlockSpec((B, d_blk), lambda d, c: (0, d)),
        ),
        scratch_shapes=[pltpu.VMEM((B, d_blk), jnp.float32)],    # membrane carry
    )

    spikes, mem_f = pl.pallas_call(
        _lif_seq_kernel,
        out_shape=(
            jax.ShapeDtypeStruct((T, B, D), spike_dtype),        # spikes per step
            jax.ShapeDtypeStruct((B, D), jnp.float32),           # final membrane
        ),
        grid_spec=grid_spec,
        compiler_params=pltpu.CompilerParams(
            dimension_semantics=("parallel", "arbitrary")),
    )(delta_seq, mem0, _as_params(threshold, leak))

    # max/min of the FINAL-step membrane (PyTorch overwrite semantics); trivial
    # reduce over the small (B, D) output, kept out of the HBM-bound kernel so the
    # parallel D-axis never races on a shared scalar.
    return spikes, mem_f, jnp.max(mem_f), jnp.min(mem_f)


# ----------------------------------------------------------------------------
# Pure-JAX references (mirror the PyTorch forward exactly, incl. the divide)
# ----------------------------------------------------------------------------
def lif_step_reference(delta_mem, mem, threshold, leak):
    mem = leak * mem + delta_mem
    mem_thr = mem / threshold - 1.0
    out = (mem_thr > 0).astype(jnp.float32)
    mem = mem - threshold * out
    return out, mem, jnp.max(mem), jnp.min(mem)


def lif_sequence_reference(delta_seq, mem0, threshold, leak):
    mem = jnp.broadcast_to(jnp.asarray(mem0, jnp.float32), delta_seq.shape[1:])
    spikes = []
    mx = mn = jnp.float32(0.0)
    for t in range(delta_seq.shape[0]):
        out, mem, mx, mn = lif_step_reference(delta_seq[t], mem, threshold, leak)
        spikes.append(out)
    return jnp.stack(spikes), mem, mx, mn


# ----------------------------------------------------------------------------
# Main
# ----------------------------------------------------------------------------
if __name__ == "__main__":
    B, D, T = 16, 128, 32        # sublane-dense (also for bf16), lane-dense D
    threshold, leak = 1.0, 0.95

    key = jax.random.PRNGKey(0)
    k_step, k_seq = jax.random.split(key)

    # --- single LIF.forward step (module state after reset_mem(): zeros, (D,)) ---
    mem0 = jnp.zeros((D,), jnp.float32)
    delta_mem = jax.random.normal(k_step, (B, D), jnp.float32) * 1.5

    out, new_mem, mx, mn = lif_forward(delta_mem, mem0, threshold, leak)
    jax.block_until_ready(out)

    r_out, r_mem, r_mx, r_mn = lif_step_reference(
        delta_mem, jnp.broadcast_to(mem0, (B, D)), threshold, leak)
    assert out.shape == (B, D) and new_mem.shape == (B, D)
    assert bool(jnp.all(jnp.isfinite(new_mem)))
    assert bool(jnp.allclose(out, r_out)), "spike mismatch"
    assert bool(jnp.allclose(new_mem, r_mem, rtol=1e-5, atol=1e-5)), "mem mismatch"
    assert bool(jnp.allclose(mx, r_mx, rtol=1e-5, atol=1e-5)), "max_mem mismatch"
    assert bool(jnp.allclose(mn, r_mn, rtol=1e-5, atol=1e-5)), "min_mem mismatch"

    # --- T timesteps of LIF.forward pipelined over T-chunks in one pallas_call ---
    delta_seq = jax.random.normal(k_seq, (T, B, D), jnp.float32) * 0.8
    spikes, mem_f, mx_s, mn_s = lif_sequence_forward(
        delta_seq, mem0, threshold, leak, t_chunk=8)   # grid = (1 D-block, 4 chunks)
    jax.block_until_ready(spikes)

    r_sp, r_memf, r_mx_s, r_mn_s = lif_sequence_reference(delta_seq, mem0, threshold, leak)
    assert spikes.shape == (T, B, D) and spikes.dtype == jnp.bfloat16
    assert bool(jnp.allclose(spikes.astype(jnp.float32), r_sp)), "sequence spike mismatch"
    assert bool(jnp.allclose(mem_f, r_memf, rtol=1e-5, atol=1e-5)), "sequence mem mismatch"
    assert bool(jnp.allclose(mx_s, r_mx_s, rtol=1e-5, atol=1e-5))
    assert bool(jnp.allclose(mn_s, r_mn_s, rtol=1e-5, atol=1e-5))

    print("KERNEL_OK")
</pallas_src>

<mosaic_0001>
module attributes {stable_mosaic.version = 11 : i64} {
  func.func @_lif_step_kernel(%arg0: memref<16x128xf32, #tpu.memory_space<vmem>>, %arg1: memref<1x128xf32, #tpu.memory_space<vmem>>, %arg2: memref<2xf32, #tpu.memory_space<smem>>, %arg3: memref<16x128xf32, #tpu.memory_space<vmem>>, %arg4: memref<16x128xf32, #tpu.memory_space<vmem>>, %arg5: memref<2xf32, #tpu.memory_space<smem>>) attributes {dimension_semantics = [], scalar_prefetch = 0 : i64, scratch_operands = 0 : i64, tpu.core_type = #tpu.core_type<tc>} {
    %c0 = arith.constant 0 : index
    %0 = memref.load %arg2[%c0] : memref<2xf32, #tpu.memory_space<smem>>
    %c1 = arith.constant 1 : index
    %1 = memref.load %arg2[%c1] : memref<2xf32, #tpu.memory_space<smem>>
    %c0_0 = arith.constant 0 : index
    %c0_1 = arith.constant 0 : index
    %2 = vector.load %arg1[%c0_0, %c0_1] : memref<1x128xf32, #tpu.memory_space<vmem>>, vector<1x128xf32>
    %3 = vector.shape_cast %2 : vector<1x128xf32> to vector<1x128xf32>
    %4 = vector.broadcast %3 : vector<1x128xf32> to vector<16x128xf32>
    %5 = vector.broadcast %1 : f32 to vector<16x128xf32>
    %6 = arith.mulf %5, %4 : vector<16x128xf32>
    %c0_2 = arith.constant 0 : index
    %c0_3 = arith.constant 0 : index
    %7 = vector.load %arg0[%c0_2, %c0_3] : memref<16x128xf32, #tpu.memory_space<vmem>>, vector<16x128xf32>
    %8 = arith.addf %6, %7 : vector<16x128xf32>
    %9 = vector.broadcast %0 : f32 to vector<16x128xf32>
    %10 = arith.cmpf ogt, %8, %9 : vector<16x128xf32>
    %11 = arith.extui %10 : vector<16x128xi1> to vector<16x128xi32>
    %12 = arith.sitofp %11 : vector<16x128xi32> to vector<16x128xf32>
    %13 = vector.broadcast %0 : f32 to vector<16x128xf32>
    %14 = arith.mulf %13, %12 : vector<16x128xf32>
    %15 = arith.subf %8, %14 : vector<16x128xf32>
    %c0_4 = arith.constant 0 : index
    %c0_5 = arith.constant 0 : index
    %16 = vector.load %arg3[%c0_4, %c0_5] : memref<16x128xf32, #tpu.memory_space<vmem>>, vector<16x128xf32>
    tpu.vector_store %arg3[%c0_4, %c0_5], %12 {strides = array<i32>} : memref<16x128xf32, #tpu.memory_space<vmem>>, vector<16x128xf32>,
    %c0_6 = arith.constant 0 : index
    %c0_7 = arith.constant 0 : index
    %17 = vector.load %arg4[%c0_6, %c0_7] : memref<16x128xf32, #tpu.memory_space<vmem>>, vector<16x128xf32>
    tpu.vector_store %arg4[%c0_6, %c0_7], %15 {strides = array<i32>} : memref<16x128xf32, #tpu.memory_space<vmem>>, vector<16x128xf32>,
    %18 = vector.shape_cast %15 : vector<16x128xf32> to vector<1x16x128xf32>
    %cst = arith.constant dense<0xFF800000> : vector<1xf32>
    %19 = vector.multi_reduction <maximumf>, %18, %cst [1, 2] : vector<1x16x128xf32> to vector<1xf32>
    %20 = vector.shape_cast %19 : vector<1xf32> to vector<1x1x1xf32>
    %21 = vector.extract %20[0, 0, 0] : f32 from vector<1x1x1xf32>
    %c0_8 = arith.constant 0 : index
    %22 = memref.load %arg5[%c0_8] : memref<2xf32, #tpu.memory_space<smem>>
    memref.store %21, %arg5[%c0_8] : memref<2xf32, #tpu.memory_space<smem>>
    %23 = vector.shape_cast %15 : vector<16x128xf32> to vector<1x16x128xf32>
    %cst_9 = arith.constant dense<0x7F800000> : vector<1xf32>
    %24 = vector.multi_reduction <minimumf>, %23, %cst_9 [1, 2] : vector<1x16x128xf32> to vector<1xf32>
    %25 = vector.shape_cast %24 : vector<1xf32> to vector<1x1x1xf32>
    %26 = vector.extract %25[0, 0, 0] : f32 from vector<1x1x1xf32>
    %c1_10 = arith.constant 1 : index
    %27 = memref.load %arg5[%c1_10] : memref<2xf32, #tpu.memory_space<smem>>
    memref.store %26, %arg5[%c1_10] : memref<2xf32, #tpu.memory_space<smem>>
    return
  }
}

</mosaic_0001>

<llo_original>
// kernel: lif_forward.1
$region0: #{lif_forward.1}
  #allocation0 [shape = 'u32[]', space=smem, size = 0x4, offset = 0x4, fixed_abs, tag = 'smem constant byte address 0x4 - core index']
  #allocation1 [shape = 'u32[144,128]{1,0:T(1,128)}', space=vmem, size = 0x12000, scoped, tag = 'internal scratch']
  %s0 = inlined_call_operand.hbm [shape: f32[16,128], index: 0, kind: input, shape index: {}]
  %s1 = inlined_call_operand.vmem [shape: f32[1,128], index: 1, kind: input, shape index: {}]
  %s2 = inlined_call_operand.vmem [shape: f32[2], index: 2, kind: input, shape index: {}]
  %s3 = inlined_call_operand.hbm [shape: f32[16,128], index: 3, kind: output, shape index: {0}]
  %s4 = inlined_call_operand.hbm [shape: f32[16,128], index: 4, kind: output, shape index: {1}]
  %s5 = inlined_call_operand.vmem [shape: f32[2], index: 5, kind: output, shape index: {2}]
  %6 = xla_tuple %s3, %s4, %s5
  %s7 = sld [smem:[#allocation0]]
  $region46: #{lif_forward.1} parent=0
    _
  %s9 = ssub.s32 1, %s7
  %s10 = scalar_select 0, %s9, %s7
  $region1: #{lif_forward.1} parent=0
    #allocation2 [shape = 'u8[8192]{0}', space=vmem, size = 0x2000, scoped, tag = 'input window, operand 0, single buffered']
    #allocation3 [shape = 's32[1]{0}', space=sflag, size = 0x4, scoped, tag = 'scoped memory for lif_forward.1']
    #allocation4 [shape = 's32[1]{0}', space=sflag, size = 0x4, scoped, tag = 'scoped memory for lif_forward.1']
    #allocation5 [shape = 's32[1]{0}', space=sflag, size = 0x4, scoped, tag = 'scoped memory for lif_forward.1']
    #allocation6 [shape = 's32[1]{0}', space=sflag, size = 0x4, scoped, tag = 'scoped memory for lif_forward.1']
    #allocation7 [shape = 'u8[512]{0}', space=smem, size = 0x200, scoped, tag = 'input window, operand 2, single buffered']
    #allocation8 [shape = 'u8[8192]{0}', space=vmem, size = 0x2000, scoped, tag = 'output window, operand 0, single buffered']
    #allocation9 [shape = 'u8[8192]{0}', space=vmem, size = 0x2000, scoped, tag = 'output window, operand 1, single buffered']
    #allocation10 [shape = 's32[1]{0}', space=sflag, size = 0x4, scoped, tag = 'scoped memory for lif_forward.1']
    #allocation11 [shape = 'u8[512]{0}', space=smem, size = 0x200, scoped, tag = 'output window, operand 2, single buffered']
    %11 = vsyncpa [#allocation3], 0
    %12 = vsyncpa [#allocation5], 0
    %13 = vsyncpa [#allocation4], 0
    %14 = vsyncpa [#allocation10], 0
    %15 = vsyncpa [#allocation6], 0
    // Predicated region
    $region2: #{lif_forward.1} parent=1 // pred_check
      _
    $region3: #{lif_forward.1} parent=1 // pred_check_branch
      %17 = sbr.rel (0) target = $region5
    $region4: #{lif_forward.1} parent=1 // pred_region
      %s19 = ssub.s32 256, 256
      %20 = vsyncadd [#allocation3], %s19
      %s21 = sshll.u32 [#allocation2], 4
      %s22 = int_to_ptr.vmem [resolvable:$true] %s21
      %27 = dma.hbm_to_vmem [thread:$0]  %s0, 256, %s22, [#allocation3], 128, 128, 8
    $region5: #{lif_forward.1} parent=1 // pred_fallthru
      _
    // Predicated region
    $region6: #{lif_forward.1} parent=1 // pred_check
      _
    $region7: #{lif_forward.1} parent=1 // pred_check_branch
      %29 = sbr.rel (0) target = $region9
    $region8: #{lif_forward.1} parent=1 // pred_region
      _
    $region9: #{lif_forward.1} parent=1 // pred_fallthru
      _
    // Predicated region
    $region10: #{lif_forward.1} parent=1 // pred_check
      _
    $region11: #{lif_forward.1} parent=1 // pred_check_branch
      %31 = sbr.rel (0) target = $region13
    $region12: #{lif_forward.1} parent=1 // pred_region
      %s33 = ssub.s32 16, 16
      %34 = vsyncadd [#allocation5], %s33
      %s36 = sshll.u32 %s2, 4
      %s37 = int_to_ptr.vmem [resolvable:$true] %s36
      %39 = dma.vmem_to_smem %s37, 16, [#allocation7], [#allocation5]
    $region13: #{lif_forward.1} parent=1 // pred_fallthru
      _
    // Predicated region
    $region14: #{lif_forward.1} parent=1 // pred_check
      _
    $region15: #{lif_forward.1} parent=1 // pred_check_branch
      %41 = sbr.rel (0) target = $region17
    $region16: #{lif_forward.1} parent=1 // pred_region
      %42 = dma.done [#allocation3], 256
    $region17: #{lif_forward.1} parent=1 // pred_fallthru
      _
    // Predicated region
    $region18: #{lif_forward.1} parent=1 // pred_check
      _
    $region19: #{lif_forward.1} parent=1 // pred_check_branch
      %44 = sbr.rel (0) target = $region21
    $region20: #{lif_forward.1} parent=1 // pred_region
      %45 = dma.done [#allocation5], 16
    $region21: #{lif_forward.1} parent=1 // pred_fallthru
      _
    %46 = sfence
    %s47 = sld [smem:[#allocation7]]
    %s48 = sld [smem:[#allocation7 + $0x1]]
    %v49 = vld [vmem:[%s1] sm:$0x1]
    %v51 = vlaneseq
    %v52 = vshrl.u32 %v51, 7
    %v53 = vsub.s32 0, %v52
    %v54 = vrot.slane %v49, %v53
    %v56 = vstv %s48
    %v57 = vmul.f32 %v56, %v54
    %v58 = vld [vmem:[#allocation2] sm:$0xff]
    %v59 = vld [vmem:[#allocation2 + $0x8] sm:$0xff]
    %v60 = vadd.f32 %v57, %v58
    %v61 = vadd.f32 %v57, %v59
    %v62 = vstv %s47
    %vm63 = vcmp.gt.f32.partialorder %v60, %v62
    %vm64 = vcmp.gt.f32.partialorder %v61, %v62
    %v65 = vsel %vm63, 1, 0
    %v66 = vsel %vm64, 1, 0
    %v67 = vcvt.s32.f32 %v65
    %v68 = vcvt.s32.f32 %v66
    %v69 = vmul.f32 %v62, %v67
    %v70 = vmul.f32 %v62, %v68
    %v71 = vsub.f32 %v60, %v69
    %v72 = vsub.f32 %v61, %v70
    %73 = vst [vmem:[#allocation8] sm:$0xff] %v67
    %74 = vst [vmem:[#allocation8 + $0x8] sm:$0xff] %v68
    %75 = vst [vmem:[#allocation9] sm:$0xff] %v71
    %76 = vst [vmem:[#allocation9 + $0x8] sm:$0xff] %v72
    %v77 = vmax.f32 %v71, %v72
    %78 = vmax.xlane.f32.xlu0 %v77
    %v79 = vpop.xlane.xlu0 %78
    %v80 = vrot.slane %v79, 4
    %v81 = vmax.f32 %v79, %v80
    %v82 = vrot.slane %v81, 2
    %v83 = vmax.f32 %v81, %v82
    %v84 = vrot.slane %v83, 1
    %v85 = vmax.f32 %v83, %v84
    %s86 = vtos %v85
    %s87 = scalar_lea.smem [#allocation11], 0
    %88 = sst [smem:[%s87]] %s86
    %v89 = vmin.f32 %v71, %v72
    %90 = vmin.xlane.f32.xlu0 %v89
    %v91 = vpop.xlane.xlu0 %90
    %v92 = vrot.slane %v91, 4
    %v93 = vmin.f32 %v91, %v92
    %v94 = vrot.slane %v93, 2
    %v95 = vmin.f32 %v93, %v94
    %v96 = vrot.slane %v95, 1
    %v97 = vmin.f32 %v95, %v96
    %s98 = vtos %v97
    %s99 = scalar_lea.smem [#allocation11], 1
    %100 = sst [smem:[%s99]] %s98
    // Predicated region
    $region22: #{lif_forward.1} parent=1 // pred_check
      _
    $region23: #{lif_forward.1} parent=1 // pred_check_branch
      %102 = sbr.rel (0) target = $region25
    $region24: #{lif_forward.1} parent=1 // pred_region
      %s104 = ssub.s32 256, 256
      %105 = vsyncadd [#allocation4], %s104
      %s106 = sshll.u32 [#allocation8], 4
      %s107 = int_to_ptr.vmem [resolvable:$true] %s106
      %112 = dma.vmem_to_hbm [thread:$0]  %s107, 256, %s3, [#allocation4], 128, 128, 8
    $region25: #{lif_forward.1} parent=1 // pred_fallthru
      _
    // Predicated region
    $region26: #{lif_forward.1} parent=1 // pred_check
      _
    $region27: #{lif_forward.1} parent=1 // pred_check_branch
      %114 = sbr.rel (0) target = $region29
    $region28: #{lif_forward.1} parent=1 // pred_region
      %s116 = ssub.s32 256, 256
      %117 = vsyncadd [#allocation10], %s116
      %s118 = sshll.u32 [#allocation9], 4
      %s119 = int_to_ptr.vmem [resolvable:$true] %s118
      %124 = dma.vmem_to_hbm [thread:$0]  %s119, 256, %s4, [#allocation10], 128, 128, 8
    $region29: #{lif_forward.1} parent=1 // pred_fallthru
      _
    // Predicated region
    $region30: #{lif_forward.1} parent=1 // pred_check
      _
    $region31: #{lif_forward.1} parent=1 // pred_check_branch
      %126 = sbr.rel (0) target = $region33
    $region32: #{lif_forward.1} parent=1 // pred_region
      %s128 = ssub.s32 16, 16
      %129 = vsyncadd [#allocation6], %s128
      %s131 = sshll.u32 %s5, 4
      %s132 = int_to_ptr.vmem [resolvable:$true] %s131
      %134 = dma.smem_to_vmem [#allocation11], 16, %s132, [#allocation6]
    $region33: #{lif_forward.1} parent=1 // pred_fallthru
      _
    // Predicated region
    $region34: #{lif_forward.1} parent=1 // pred_check
      _
    $region35: #{lif_forward.1} parent=1 // pred_check_branch
      %136 = sbr.rel (0) target = $region37
    $region36: #{lif_forward.1} parent=1 // pred_region
      %137 = dma.done [#allocation4], 256
    $region37: #{lif_forward.1} parent=1 // pred_fallthru
      _
    // Predicated region
    $region38: #{lif_forward.1} parent=1 // pred_check
      _
    $region39: #{lif_forward.1} parent=1 // pred_check_branch
      %139 = sbr.rel (0) target = $region41
    $region40: #{lif_forward.1} parent=1 // pred_region
      %140 = dma.done [#allocation10], 256
    $region41: #{lif_forward.1} parent=1 // pred_fallthru
      _
    // Predicated region
    $region42: #{lif_forward.1} parent=1 // pred_check
      _
    $region43: #{lif_forward.1} parent=1 // pred_check_branch
      %142 = sbr.rel (0) target = $region45
    $region44: #{lif_forward.1} parent=1 // pred_region
      %143 = dma.done [#allocation6], 16
    $region45: #{lif_forward.1} parent=1 // pred_fallthru
      _
    %144 = sfence
    %145 = vsyncpa [#allocation3], 1
    %146 = vsyncpa [#allocation4], 1
    %147 = vsyncpa [#allocation10], 1
    %148 = vsyncpa [#allocation5], 1
    %149 = vsyncpa [#allocation6], 1

</llo_original>
